<compile_context>
chip_gen: v7x
topology: tpu7x:2x2x1
jax: 0.10.0
libtpu: 0.0.40
codegen_flags: <defaults>
</compile_context>

<pallas_src>
import functools
import math

import jax
import jax.numpy as jnp
import numpy as np
from jax.experimental import pallas as pl
from jax.experimental.pallas import tpu as pltpu


def _round_up(x, m):
    return ((x + m - 1) // m) * m


def _cdiv(a, b):
    return -(-a // b)


def _vmem_limit_bytes():
    """Generation-aware scoped-VMEM limit for this kernel."""
    try:
        cap = int(pltpu.get_tpu_info().vmem_capacity_bytes)
    except Exception:  # not resolvable: fall back to a conservative default
        cap = 32 * 1024 * 1024
    # Use at most half of physical VMEM (v5e/v6e: 128 MiB -> 64 MiB,
    # v7x: 64 MiB/TC -> 32 MiB), never less than v5e's 16 MiB scoped default.
    return int(max(16 * 1024 * 1024, min(cap // 2, 64 * 1024 * 1024)))


def _bce_weighted_kernel(x_ref, t_ref, o_ref, *, tile_hw, hw_valid, k_total, kps):
    """One grid step processes a (1, c_eff, tile_hw) slab of logits/targets.

    o_ref : (1, 1, c_eff, 1) f32 resident output block — running per-row loss
            sum for the current (batch, hw-split) cell. Zeroed at k == 0,
            complete after k == kps - 1.
    """
    s = pl.program_id(1)
    k = pl.program_id(2)
    g = s * kps + k                      # global lane-tile index along packed HW

    @pl.when(k == 0)
    def _():
        o_ref[...] = jnp.zeros_like(o_ref)

    x = x_ref[0].astype(jnp.float32)     # (c_eff, tile_hw)
    t = t_ref[0].astype(jnp.float32)

    # BCEWithLogitsLoss (reduction='none'), numerically stable form:
    #   loss = max(x, 0) - x*t + log(1 + exp(-|x|))
    loss = jnp.maximum(x, 0.0) - x * t + jnp.log1p(jnp.exp(-jnp.abs(x)))

    # All but the last lane-tile are fully in-bounds: unmasked accumulate.
    @pl.when(g < k_total - 1)
    def _():
        o_ref[0, 0] += jnp.sum(loss, axis=-1, keepdims=True)

    # Last lane-tile: mask the OOB tail (garbage lanes) before it is reduced.
    @pl.when(g >= k_total - 1)
    def _():
        col = g * tile_hw + jax.lax.broadcasted_iota(jnp.int32, loss.shape, 1)
        o_ref[0, 0] += jnp.sum(jnp.where(col < hw_valid, loss, 0.0),
                               axis=-1, keepdims=True)


def bce_weighted(inputs, targets, weight, *, max_tile_hw=8192):
    """JAX/Pallas equivalent of BCEWeighted.forward.

    inputs, targets: (N, C, H, W) logits / targets (f32 or bf16; bf16 halves
                     HBM traffic, accumulation is always f32 in-kernel).
    weight:          (C,)
    returns: scalar f32
    """
    n, c, h, w = inputs.shape
    hw = h * w
    total_m = n * hw

    # --- Sublane packing: free row-major reshape (N, C, HW) -> (N, C*f, HW/f).
    pack_f = 8 // math.gcd(c, 8)
    if hw % pack_f != 0:
        pack_f = 1                                    # fall back: keep rows as-is
    c_eff = c * pack_f
    hw_p = hw // pack_f

    x3 = inputs.reshape(n, c_eff, hw_p)
    t3 = targets.reshape(n, c_eff, hw_p)

    # --- Lane-tile sizing against a generation-aware VMEM budget.
    itemsize = jnp.dtype(inputs.dtype).itemsize
    vmem_limit = _vmem_limit_bytes()
    c_pad = _round_up(c_eff, 8)                       # sublane padding in VMEM
    per_lane_bytes = c_pad * 2 * 2 * itemsize         # 2 inputs x 2 pipeline bufs
    usable = (vmem_limit * 3) // 4                    # headroom: outputs + internal scratch
    cap = max(128, (usable // per_lane_bytes) // 128 * 128)
    tile_hw = int(min(max_tile_hw, cap, _round_up(hw_p, 128)))

    k_total = _cdiv(hw_p, tile_hw)        # lane tiles per row (last may be partial)

    # --- Optional 2-way split of the HW reduction so both v7x TensorCores are
    #     busy when the batch axis alone cannot feed them.  Only when the split
    #     is exact (no index-map clamping needed); no-op cost on 1-TC chips.
    n_splits = 2 if (n == 1 and k_total >= 2 and k_total % 2 == 0) else 1
    kps = k_total // n_splits

    kernel = functools.partial(
        _bce_weighted_kernel,
        tile_hw=tile_hw, hw_valid=hw_p, k_total=k_total, kps=kps)

    sums = pl.pallas_call(
        kernel,
        out_shape=jax.ShapeDtypeStruct((n, n_splits, c_eff, 1), jnp.float32),
        grid_spec=pltpu.PrefetchScalarGridSpec(
            num_scalar_prefetch=0,
            grid=(n, n_splits, kps),
            in_specs=[
                pl.BlockSpec((1, c_eff, tile_hw),
                             lambda i, s, k: (i, 0, s * kps + k)),   # logits
                pl.BlockSpec((1, c_eff, tile_hw),
                             lambda i, s, k: (i, 0, s * kps + k)),   # targets
            ],
            out_specs=pl.BlockSpec((1, 1, c_eff, 1),
                                   lambda i, s, k: (i, s, 0, 0)),
        ),
        compiler_params=pltpu.CompilerParams(
            # batch & hw-split axes parallel (megacore shards them on v7x);
            # the lane-tile reduction axis is arbitrary.
            dimension_semantics=("parallel", "parallel", "arbitrary"),
            vmem_limit_bytes=vmem_limit,
        ),
    )(x3, t3)

    # Tiny finalize in plain JAX: combine per-batch / per-split / per-subrow
    # partial sums BEFORE dividing, then weight and mean over classes.
    per_class_sum = jnp.sum(
        sums[..., 0].reshape(n, n_splits, c, pack_f), axis=(0, 1, 3))   # (C,)
    per_class_mean = per_class_sum / jnp.float32(total_m)
    return jnp.mean(per_class_mean * weight.astype(jnp.float32))


def _reference(inputs, targets, weight):
    """Pure-JAX reference matching the PyTorch forward."""
    x = inputs.astype(jnp.float32)
    t = targets.astype(jnp.float32)
    loss = jnp.maximum(x, 0.0) - x * t + jnp.log1p(jnp.exp(-jnp.abs(x)))
    c = x.shape[1]
    per_class = jnp.transpose(loss, (1, 0, 2, 3)).reshape(c, -1).mean(axis=1)
    return (per_class * weight.astype(jnp.float32)).mean()


def _check(inputs, targets, weight, *, atol=1e-5, rtol=1e-5, **kw):
    out = jax.block_until_ready(bce_weighted(inputs, targets, weight, **kw))
    ref = jax.block_until_ready(_reference(inputs, targets, weight))
    if not np.allclose(np.asarray(out), np.asarray(ref), atol=atol, rtol=rtol):
        raise AssertionError(f"mismatch: kernel={out} ref={ref}")


if __name__ == "__main__":
    key = jax.random.PRNGKey(0)
    k1, k2, k3, k4, k5, k6 = jax.random.split(key, 6)

    # 1) Module-default config: N=2, C=11 (num_classes), 16x16, unit weights.
    x1 = jax.random.normal(k1, (2, 11, 16, 16), dtype=jnp.float32)
    t1 = jax.random.uniform(k2, (2, 11, 16, 16), dtype=jnp.float32)
    w1 = jnp.ones((11,), dtype=jnp.float32)
    _check(x1, t1, w1)

    # 2) Multi-tile reduction with a partial tail tile and non-uniform weights
    #    (C=4 -> pack factor 2; max_tile_hw=128 forces several lane tiles).
    x2 = jax.random.normal(k3, (2, 4, 60, 60), dtype=jnp.float32)
    t2 = jax.random.uniform(k4, (2, 4, 60, 60), dtype=jnp.float32)
    w2 = jnp.arange(1.0, 5.0, dtype=jnp.float32) / 4.0
    _check(x2, t2, w2, max_tile_hw=128)

    # 3) bf16 inputs (half the HBM traffic), f32 accumulation in-kernel.
    x3 = jax.random.normal(k5, (2, 11, 16, 16), dtype=jnp.float32).astype(jnp.bfloat16)
    t3 = jax.random.uniform(k6, (2, 11, 16, 16), dtype=jnp.float32).astype(jnp.bfloat16)
    w3 = jnp.linspace(0.5, 1.5, 11, dtype=jnp.float32)
    _check(x3, t3, w3, atol=1e-4, rtol=1e-4)

    print("KERNEL_OK")
</pallas_src>

<mosaic_0001>
module attributes {stable_mosaic.version = 11 : i64} {
  func.func @_bce_weighted_kernel(%arg0: i32, %arg1: i32, %arg2: i32, %arg3: memref<1x88x128xf32, #tpu.memory_space<vmem>>, %arg4: memref<1x88x128xf32, #tpu.memory_space<vmem>>, %arg5: memref<1x1x88x1xf32, #tpu.memory_space<vmem>>) attributes {dimension_semantics = [#tpu.dimension_semantics<parallel>, #tpu.dimension_semantics<parallel>, #tpu.dimension_semantics<arbitrary>], iteration_bounds = array<i64: 2, 1, 1>, scalar_prefetch = 0 : i64, scratch_operands = 0 : i64, tpu.core_type = #tpu.core_type<tc>, window_params = [{transform_indices = @transform_0, window_bounds = array<i64: 1, 88, 128>}, {transform_indices = @transform_1, window_bounds = array<i64: 1, 88, 128>}, {transform_indices = @transform_2, window_bounds = array<i64: 1, 1, 88, 1>}]} {
    %c1_i32 = arith.constant 1 : i32
    %0 = arith.muli %arg1, %c1_i32 : i32
    %1 = arith.addi %0, %arg2 : i32
    %c0_i32 = arith.constant 0 : i32
    %2 = arith.cmpi eq, %arg2, %c0_i32 : i32
    %3 = arith.extui %2 : i1 to i32
    %c0_i32_0 = arith.constant 0 : i32
    %4 = arith.cmpi ne, %3, %c0_i32_0 : i32
    scf.if %4 {
      %cst_11 = arith.constant 0.000000e+00 : f32
      %25 = vector.broadcast %cst_11 : f32 to vector<1x1x88x1xf32>
      %c0_12 = arith.constant 0 : index
      %c0_13 = arith.constant 0 : index
      %c0_14 = arith.constant 0 : index
      %c0_15 = arith.constant 0 : index
      %26 = vector.load %arg5[%c0_12, %c0_13, %c0_14, %c0_15] : memref<1x1x88x1xf32, #tpu.memory_space<vmem>>, vector<1x1x88x1xf32>
      tpu.vector_store %arg5[%c0_12, %c0_13, %c0_14, %c0_15], %25 {strides = array<i32>} : memref<1x1x88x1xf32, #tpu.memory_space<vmem>>, vector<1x1x88x1xf32>,
    } else {
    }
    %c0 = arith.constant 0 : index
    %c0_1 = arith.constant 0 : index
    %c0_2 = arith.constant 0 : index
    %5 = vector.load %arg3[%c0, %c0_1, %c0_2] : memref<1x88x128xf32, #tpu.memory_space<vmem>>, vector<1x88x128xf32>
    %6 = vector.shape_cast %5 : vector<1x88x128xf32> to vector<88x128xf32>
    %c0_3 = arith.constant 0 : index
    %c0_4 = arith.constant 0 : index
    %c0_5 = arith.constant 0 : index
    %7 = vector.load %arg4[%c0_3, %c0_4, %c0_5] : memref<1x88x128xf32, #tpu.memory_space<vmem>>, vector<1x88x128xf32>
    %8 = vector.shape_cast %7 : vector<1x88x128xf32> to vector<88x128xf32>
    %cst = arith.constant 0.000000e+00 : f32
    %9 = vector.broadcast %cst : f32 to vector<88x128xf32>
    %10 = arith.maximumf %6, %9 : vector<88x128xf32>
    %11 = arith.mulf %6, %8 : vector<88x128xf32>
    %12 = arith.subf %10, %11 : vector<88x128xf32>
    %13 = math.absf %6 : vector<88x128xf32>
    %cst_6 = arith.constant 0.000000e+00 : f32
    %14 = vector.broadcast %cst_6 : f32 to vector<88x128xf32>
    %15 = arith.subf %14, %13 : vector<88x128xf32>
    %16 = math.exp %15 : vector<88x128xf32>
    %17 = math.log1p %16 : vector<88x128xf32>
    %18 = arith.addf %12, %17 : vector<88x128xf32>
    %c0_i32_7 = arith.constant 0 : i32
    %19 = arith.cmpi slt, %1, %c0_i32_7 : i32
    %20 = arith.extui %19 : i1 to i32
    %c0_i32_8 = arith.constant 0 : i32
    %21 = arith.cmpi ne, %20, %c0_i32_8 : i32
    scf.if %21 {
      %c0_11 = arith.constant 0 : index
      %c0_12 = arith.constant 0 : index
      %c0_13 = arith.constant 0 : index
      %c0_14 = arith.constant 0 : index
      %25 = vector.load %arg5[%c0_11, %c0_12, %c0_13, %c0_14] : memref<1x1x88x1xf32, #tpu.memory_space<vmem>>, vector<1x1x88x1xf32>
      %26 = vector.shape_cast %25 : vector<1x1x88x1xf32> to vector<88x1xf32>
      %cst_15 = arith.constant dense<0.000000e+00> : vector<88xf32>
      %27 = vector.multi_reduction <add>, %18, %cst_15 [1] : vector<88x128xf32> to vector<88xf32>
      %28 = vector.shape_cast %27 : vector<88xf32> to vector<88x1xf32>
      %29 = arith.addf %26, %28 : vector<88x1xf32>
      %c0_16 = arith.constant 0 : index
      %c0_17 = arith.constant 0 : index
      %c0_18 = arith.constant 0 : index
      %c0_19 = arith.constant 0 : index
      %30 = vector.load %arg5[%c0_16, %c0_17, %c0_18, %c0_19] : memref<1x1x88x1xf32, #tpu.memory_space<vmem>>, vector<1x1x88x1xf32>
      %31 = vector.shape_cast %30 : vector<1x1x88x1xf32> to vector<88x1xf32>
      %32 = vector.shape_cast %29 : vector<88x1xf32> to vector<1x1x88x1xf32>
      tpu.vector_store %arg5[%c0_16, %c0_17, %c0_18, %c0_19], %32 {strides = array<i32>} : memref<1x1x88x1xf32, #tpu.memory_space<vmem>>, vector<1x1x88x1xf32>,
    } else {
    }
    %c0_i32_9 = arith.constant 0 : i32
    %22 = arith.cmpi sge, %1, %c0_i32_9 : i32
    %23 = arith.extui %22 : i1 to i32
    %c0_i32_10 = arith.constant 0 : i32
    %24 = arith.cmpi ne, %23, %c0_i32_10 : i32
    scf.if %24 {
      %c128_i32 = arith.constant 128 : i32
      %25 = arith.muli %1, %c128_i32 : i32
      %26 = tpu.iota {dimensions = array<i32: 1>} : vector<88x128xi32>
      %27 = vector.broadcast %25 : i32 to vector<88x128xi32>
      %28 = arith.addi %27, %26 : vector<88x128xi32>
      %c0_11 = arith.constant 0 : index
      %c0_12 = arith.constant 0 : index
      %c0_13 = arith.constant 0 : index
      %c0_14 = arith.constant 0 : index
      %29 = vector.load %arg5[%c0_11, %c0_12, %c0_13, %c0_14] : memref<1x1x88x1xf32, #tpu.memory_space<vmem>>, vector<1x1x88x1xf32>
      %30 = vector.shape_cast %29 : vector<1x1x88x1xf32> to vector<88x1xf32>
      %c32_i32 = arith.constant 32 : i32
      %31 = vector.broadcast %c32_i32 : i32 to vector<88x128xi32>
      %32 = arith.cmpi slt, %28, %31 : vector<88x128xi32>
      %cst_15 = arith.constant 0.000000e+00 : f32
      %33 = vector.broadcast %cst_15 : f32 to vector<88x128xf32>
      %34 = arith.select %32, %18, %33 : vector<88x128xi1>, vector<88x128xf32>
      %cst_16 = arith.constant dense<0.000000e+00> : vector<88xf32>
      %35 = vector.multi_reduction <add>, %34, %cst_16 [1] : vector<88x128xf32> to vector<88xf32>
      %36 = vector.shape_cast %35 : vector<88xf32> to vector<88x1xf32>
      %37 = arith.addf %30, %36 : vector<88x1xf32>
      %c0_17 = arith.constant 0 : index
      %c0_18 = arith.constant 0 : index
      %c0_19 = arith.constant 0 : index
      %c0_20 = arith.constant 0 : index
      %38 = vector.load %arg5[%c0_17, %c0_18, %c0_19, %c0_20] : memref<1x1x88x1xf32, #tpu.memory_space<vmem>>, vector<1x1x88x1xf32>
      %39 = vector.shape_cast %38 : vector<1x1x88x1xf32> to vector<88x1xf32>
      %40 = vector.shape_cast %37 : vector<88x1xf32> to vector<1x1x88x1xf32>
      tpu.vector_store %arg5[%c0_17, %c0_18, %c0_19, %c0_20], %40 {strides = array<i32>} : memref<1x1x88x1xf32, #tpu.memory_space<vmem>>, vector<1x1x88x1xf32>,
    } else {
    }
    return
  }
  func.func @transform_0(%arg0: i32, %arg1: i32, %arg2: i32) -> (i32, i32, i32) {
    %c1_i32 = arith.constant 1 : i32
    %0 = arith.muli %arg1, %c1_i32 : i32
    %1 = arith.addi %0, %arg2 : i32
    %c0_i32 = arith.constant 0 : i32
    %c0_i32_0 = arith.constant 0 : i32
    return %arg0, %c0_i32, %1 : i32, i32, i32
  }
  func.func @transform_1(%arg0: i32, %arg1: i32, %arg2: i32) -> (i32, i32, i32) {
    %c1_i32 = arith.constant 1 : i32
    %0 = arith.muli %arg1, %c1_i32 : i32
    %1 = arith.addi %0, %arg2 : i32
    %c0_i32 = arith.constant 0 : i32
    %c0_i32_0 = arith.constant 0 : i32
    return %arg0, %c0_i32, %1 : i32, i32, i32
  }
  func.func @transform_2(%arg0: i32, %arg1: i32, %arg2: i32) -> (i32, i32, i32, i32) {
    %c0_i32 = arith.constant 0 : i32
    %c0_i32_0 = arith.constant 0 : i32
    %c0_i32_1 = arith.constant 0 : i32
    return %arg0, %arg1, %c0_i32, %c0_i32_0 : i32, i32, i32, i32
  }
}

</mosaic_0001>

<llo_original>
// kernel: tpu_custom_call.1
$region0: #{tpu_custom_call.1}
  #allocation0 [shape = 'u32[]', space=smem, size = 0x4, offset = 0x4, fixed_abs, tag = 'smem constant byte address 0x4 - core index']
  #allocation1 [shape = 'u32[144,128]{1,0:T(1,128)}', space=vmem, size = 0x12000, scoped, tag = 'internal scratch']
  %s0 = inlined_call_operand.vmem [shape: f32[2,88,32], index: 0, kind: input, shape index: {}]
  %s1 = inlined_call_operand.vmem [shape: f32[2,88,32], index: 1, kind: input, shape index: {}]
  %s2 = inlined_call_operand.vmem [shape: f32[2,1,88,1], index: 2, kind: output, shape index: {}]
  %s3 = sld [smem:[#allocation0]]
  $region53: #{tpu_custom_call.1} parent=0
    _
  %s5 = ssub.s32 1, %s3
  %s6 = scalar_select 0, %s5, %s3
  loop: start=0, step=1, limit=4
  $region2: #{tpu_custom_call.1} parent=0 // loop_pre_header
    _
  $region3: #{tpu_custom_call.1} parent=0 // loop_header
    %s8 = sphi 0, %s12
    %p9 = scmp.ge.s32.totalorder %s8, 4
    %s15 = sphi 0, %s34
    %s16 = sphi 0, %s30
    %s17 = sphi 0, %s26
    %s18 = sphi 0, %s15
    %s19 = sphi 0, %s16
    %s20 = sphi 0, %s17
    %s21 = sphi 0, %s18
    %s22 = sphi 0, %s19
    %s23 = sphi 0, %s20
    %s41 = sphi 0, %s43
    %s44 = sphi 0, %s41
    %s45 = sphi 0, %s44
    %s61 = sphi 0, %s45
    %s71 = sphi 0, %s73
    %s74 = sphi 0, %s71
    %s75 = sphi 0, %s74
    %s91 = sphi 0, %s75
    %s99 = sphi 0, %s101
    %s102 = sphi 0, %s99
    %s103 = sphi 0, %s102
    %s119 = sphi 0, %s103
  $region4: #{tpu_custom_call.1} parent=0 // loop_header_branch
    %11 = sbr.rel (%p9) target = $region8
  $region5: #{tpu_custom_call.1} parent=0 // loop_body
    %s13 = ssub.s32 %s8, 1
    %s14 = ssub.s32 %s8, 2
    %s24 = sadd.s32 1, %s17
    %p25 = scmp.ge.s32.totalorder %s24, 1
    %s26 = scalar_select %p25, 0, %s24
    %s27 = sadd.s32 1, %s16
    %s28 = scalar_select %p25, %s27, %s16
    %p29 = scmp.ge.s32.totalorder %s28, 1
    %s30 = scalar_select %p29, 0, %s28
    %s31 = sadd.s32 1, %s15
    %s32 = scalar_select %p29, %s31, %s15
    %p33 = scmp.ge.s32.totalorder %s32, 2
    %s34 = scalar_select %p33, 0, %s32
    %s35 = sadd.s32 %s16, %s17
    %s36 = sadd.s32 %s30, %s26
    %s37 = ssub.s32 %s15, %s34
    %s38 = ssub.s32 %s35, %s36
    %s39 = sor.u32 %s37, %s38
    %p40 = scmp.eq.s32.totalorder %s39, 0
    %s42 = sadd.s32 %s41, 1
    %s43 = scalar_select %p40, %s41, %s42
    %p46 = pneg %p40
    %p47 = scmp.eq.s32.totalorder %s8, 1
    %p48 = por %p46, %p47
    %p49 = scmp.ne.s32.totalorder %s41, %s44
    %p50 = scmp.eq.s32.totalorder %s8, 0
    %p51 = por %p49, %p50
    %p52 = scmp.ne.s32.totalorder %s41, %s44
    %p53 = scmp.eq.s32.totalorder %s13, 1
    %p54 = por %p52, %p53
    %p55 = scmp.ne.s32.totalorder %s44, %s45
    %p56 = scmp.eq.s32.totalorder %s13, 0
    %p57 = por %p55, %p56
    %p58 = scmp.ne.s32.totalorder %s44, %s45
    %p59 = scmp.eq.s32.totalorder %s14, 1
    %p60 = por %p58, %p59
    %p62 = scmp.ne.s32.totalorder %s45, %s61
    %p63 = scmp.eq.s32.totalorder %s14, 0
    %p64 = por %p62, %p63
    %s65 = sadd.s32 %s16, %s17
    %s66 = sadd.s32 %s30, %s26
    %s67 = ssub.s32 %s15, %s34
    %s68 = ssub.s32 %s65, %s66
    %s69 = sor.u32 %s67, %s68
    %p70 = scmp.eq.s32.totalorder %s69, 0
    %s72 = sadd.s32 %s71, 1
    %s73 = scalar_select %p70, %s71, %s72
    %p76 = pneg %p70
    %p77 = scmp.eq.s32.totalorder %s8, 1
    %p78 = por %p76, %p77
    %p79 = scmp.ne.s32.totalorder %s71, %s74
    %p80 = scmp.eq.s32.totalorder %s8, 0
    %p81 = por %p79, %p80
    %p82 = scmp.ne.s32.totalorder %s71, %s74
    %p83 = scmp.eq.s32.totalorder %s13, 1
    %p84 = por %p82, %p83
    %p85 = scmp.ne.s32.totalorder %s74, %s75
    %p86 = scmp.eq.s32.totalorder %s13, 0
    %p87 = por %p85, %p86
    %p88 = scmp.ne.s32.totalorder %s74, %s75
    %p89 = scmp.eq.s32.totalorder %s14, 1
    %p90 = por %p88, %p89
    %p92 = scmp.ne.s32.totalorder %s75, %s91
    %p93 = scmp.eq.s32.totalorder %s14, 0
    %p94 = por %p92, %p93
    %s95 = ssub.s32 %s15, %s34
    %s96 = ssub.s32 %s16, %s30
    %s97 = sor.u32 %s95, %s96
    %p98 = scmp.eq.s32.totalorder %s97, 0
    %s100 = sadd.s32 %s99, 1
    %s101 = scalar_select %p98, %s99, %s100
    %p104 = pneg %p98
    %p105 = scmp.eq.s32.totalorder %s8, 1
    %p106 = por %p104, %p105
    %p107 = scmp.ne.s32.totalorder %s99, %s102
    %p108 = scmp.eq.s32.totalorder %s8, 0
    %p109 = por %p107, %p108
    %p110 = scmp.ne.s32.totalorder %s99, %s102
    %p111 = scmp.eq.s32.totalorder %s13, 1
    %p112 = por %p110, %p111
    %p113 = scmp.ne.s32.totalorder %s102, %s103
    %p114 = scmp.eq.s32.totalorder %s13, 0
    %p115 = por %p113, %p114
    %p116 = scmp.ne.s32.totalorder %s102, %s103
    %p117 = scmp.eq.s32.totalorder %s14, 1
    %p118 = por %p116, %p117
    %p120 = scmp.ne.s32.totalorder %s103, %s119
    %p121 = scmp.eq.s32.totalorder %s14, 0
    %p122 = por %p120, %p121
    %p123 = scmp.le.s32.totalorder 1, %s8
    %p124 = scmp.lt.s32.totalorder %s8, 3
    %p125 = pnand %p123, %p124
    %p126 = pneg %p125
    // Predicated region
    $region9: #{tpu_custom_call.1} parent=5 // pred_check
      _
    $region10: #{tpu_custom_call.1} parent=5 // pred_check_branch
      %128 = sbr.rel (%p125) target = $region12
    $region11: #{tpu_custom_call.1} parent=5 // pred_region
      %s129 = ssub.s32 %s8, 1
    $region12: #{tpu_custom_call.1} parent=5 // pred_fallthru
      _
    %p130 = scmp.lt.s32.totalorder %s8, 2
    // Predicated region
    $region13: #{tpu_custom_call.1} parent=5 // pred_check
      %p131 = pneg %p130
    $region14: #{tpu_custom_call.1} parent=5 // pred_check_branch
      %133 = sbr.rel (%p131) target = $region16
    $region15: #{tpu_custom_call.1} parent=5 // pred_region
      // Predicated region
      $region17: #{tpu_custom_call.1} parent=15 // pred_check
        %p134 = pneg %p51
      $region18: #{tpu_custom_call.1} parent=15 // pred_check_branch
        %136 = sbr.rel (%p134) target = $region20
      $region19: #{tpu_custom_call.1} parent=15 // pred_region
        %s137 = sadd.s32 %s16, %s17
        %p138 = scmp.lt.s32.totalorder %s15, 1
        %s139 = scalar_select %p138, %s15, 1
        %p140 = scmp.lt.s32.totalorder %s137, 0
        %s141 = scalar_select %p140, %s137, 0
        %s142 = smul.addr %s139, 11
        %s143 = sadd.s32 %s141, %s142
        %s144 = smul.addr %s143, 8
        %s145 = scalar_lea.vmem %s0, %s144
        %s146 = sadd.s32 %s16, %s17
      $region20: #{tpu_custom_call.1} parent=15 // pred_fallthru
        _
      // Predicated region
      $region21: #{tpu_custom_call.1} parent=15 // pred_check
        %p147 = pneg %p81
      $region22: #{tpu_custom_call.1} parent=15 // pred_check_branch
        %149 = sbr.rel (%p147) target = $region24
      $region23: #{tpu_custom_call.1} parent=15 // pred_region
        %s150 = sadd.s32 %s16, %s17
        %p151 = scmp.lt.s32.totalorder %s15, 1
        %s152 = scalar_select %p151, %s15, 1
        %p153 = scmp.lt.s32.totalorder %s150, 0
        %s154 = scalar_select %p153, %s150, 0
        %s155 = smul.addr %s152, 11
        %s156 = sadd.s32 %s154, %s155
        %s157 = smul.addr %s156, 8
        %s158 = scalar_lea.vmem %s1, %s157
        %s159 = sadd.s32 %s16, %s17
      $region24: #{tpu_custom_call.1} parent=15 // pred_fallthru
        _
    $region16: #{tpu_custom_call.1} parent=5 // pred_fallthru
      _
    %p160 = scmp.le.s32.totalorder 1, %s8
    %p161 = scmp.lt.s32.totalorder %s8, 3
    %p162 = pnand %p160, %p161
    %p163 = pneg %p162
    // Predicated region
    $region25: #{tpu_custom_call.1} parent=5 // pred_check
      _
    $region26: #{tpu_custom_call.1} parent=5 // pred_check_branch
      %165 = sbr.rel (%p162) target = $region28
    $region27: #{tpu_custom_call.1} parent=5 // pred_region
      %s166 = ssub.s32 %s8, 1
      %s167 = sadd.s32 %s19, %s20
      %p168 = scmp.lt.s32.totalorder %s18, 1
      %s169 = scalar_select %p168, %s18, 1
      %p170 = scmp.lt.s32.totalorder %s167, 0
      %s171 = scalar_select %p170, %s167, 0
      %s172 = smul.addr %s169, 11
      %s173 = sadd.s32 %s171, %s172
      %s174 = smul.addr %s173, 8
      %s175 = scalar_lea.vmem %s0, %s174
      %p176 = pneg %p57
      %p177 = pneg %p54
      %s178 = sadd.s32 %s19, %s20
      %p179 = scmp.lt.s32.totalorder %s18, 1
      %s180 = scalar_select %p179, %s18, 1
      %p181 = scmp.lt.s32.totalorder %s178, 0
      %s182 = scalar_select %p181, %s178, 0
      %s183 = smul.addr %s180, 11
      %s184 = sadd.s32 %s182, %s183
      %s185 = smul.addr %s184, 8
      %s186 = scalar_lea.vmem %s1, %s185
      %p187 = pneg %p87
      %p188 = pneg %p84
      %p189 = pneg %p115
      %p190 = pneg %p112
      %p191 = scmp.lt.s32.totalorder %s18, 1
      %s192 = scalar_select %p191, %s18, 1
      %p193 = scmp.lt.s32.totalorder %s19, 0
      %s194 = scalar_select %p193, %s19, 0
      %s195 = smul.addr %s194, 11
      %s196 = smul.addr %s192, 11
      %s197 = sadd.s32 %s195, %s196
      %s198 = smul.addr %s197, 8
      %s199 = scalar_lea.vmem %s2, %s198
      %s200 = sadd.s32 %s19, %s20
      %p201 = scmp.lt.s32.totalorder %s18, 1
      %s202 = scalar_select %p201, %s18, 1
      %p203 = scmp.lt.s32.totalorder %s200, 0
      %s204 = scalar_select %p203, %s200, 0
      %s205 = smul.addr %s202, 11
      %s206 = sadd.s32 %s204, %s205
      %s207 = smul.addr %s206, 8
      %s208 = scalar_lea.vmem %s0, %s207
      %s209 = sadd.s32 %s19, %s20
      %s210 = sadd.s32 %s19, %s20
      %p211 = scmp.lt.s32.totalorder %s18, 1
      %s212 = scalar_select %p211, %s18, 1
      %p213 = scmp.lt.s32.totalorder %s210, 0
      %s214 = scalar_select %p213, %s210, 0
      %s215 = smul.addr %s212, 11
      %s216 = sadd.s32 %s214, %s215
      %s217 = smul.addr %s216, 8
      %s218 = scalar_lea.vmem %s1, %s217
      %s219 = sadd.s32 %s19, %s20
      %p220 = scmp.lt.s32.totalorder %s18, 1
      %s221 = scalar_select %p220, %s18, 1
      %p222 = scmp.lt.s32.totalorder %s19, 0
      %s223 = scalar_select %p222, %s19, 0
      %s224 = smul.addr %s223, 11
      %s225 = smul.addr %s221, 11
      %s226 = sadd.s32 %s224, %s225
      %s227 = smul.addr %s226, 8
      %s228 = scalar_lea.vmem %s2, %s227
      %s229 = sadd.s32 %s19, %s20
      %p230 = scmp.eq.s32.totalorder %s20, 0
      // Predicated region
      $region29: #{tpu_custom_call.1} parent=27 // pred_check
        %p231 = pneg %p230
      $region30: #{tpu_custom_call.1} parent=27 // pred_check_branch
        %233 = sbr.rel (%p231) target = $region32
      $region31: #{tpu_custom_call.1} parent=27 // pred_region
        %vm234 = vcmask 7168
        %235 = vst.msk [vmem:[%s228] sm:$0xff] %vm234, 0.0
        %236 = vst.msk [vmem:[%s228 + $0x8] sm:$0xff] %vm234, 0.0
        %237 = vst.msk [vmem:[%s228 + $0x10] sm:$0xff] %vm234, 0.0
        %238 = vst.msk [vmem:[%s228 + $0x18] sm:$0xff] %vm234, 0.0
        %239 = vst.msk [vmem:[%s228 + $0x20] sm:$0xff] %vm234, 0.0
        %240 = vst.msk [vmem:[%s228 + $0x28] sm:$0xff] %vm234, 0.0
        %241 = vst.msk [vmem:[%s228 + $0x30] sm:$0xff] %vm234, 0.0
        %242 = vst.msk [vmem:[%s228 + $0x38] sm:$0xff] %vm234, 0.0
        %243 = vst.msk [vmem:[%s228 + $0x40] sm:$0xff] %vm234, 0.0
        %244 = vst.msk [vmem:[%s228 + $0x48] sm:$0xff] %vm234, 0.0
        %245 = vst.msk [vmem:[%s228 + $0x50] sm:$0xff] %vm234, 0.0
      $region32: #{tpu_custom_call.1} parent=27 // pred_fallthru
        _
      %v246 = vld [vmem:[%s208] sm:$0xff]
      %v247 = vld [vmem:[%s208 + $0x8] sm:$0xff]
      %v248 = vld [vmem:[%s208 + $0x10] sm:$0xff]
      %v249 = vld [vmem:[%s208 + $0x18] sm:$0xff]
      %v250 = vld [vmem:[%s208 + $0x20] sm:$0xff]
      %v251 = vld [vmem:[%s208 + $0x28] sm:$0xff]
      %v252 = vld [vmem:[%s208 + $0x30] sm:$0xff]
      %v253 = vld [vmem:[%s208 + $0x38] sm:$0xff]
      %v254 = vld [vmem:[%s208 + $0x40] sm:$0xff]
      %v255 = vld [vmem:[%s208 + $0x48] sm:$0xff]
      %v256 = vld [vmem:[%s208 + $0x50] sm:$0xff]
      %v257 = vld [vmem:[%s218] sm:$0xff]
      %v258 = vld [vmem:[%s218 + $0x8] sm:$0xff]
      %v259 = vld [vmem:[%s218 + $0x10] sm:$0xff]
      %v260 = vld [vmem:[%s218 + $0x18] sm:$0xff]
      %v261 = vld [vmem:[%s218 + $0x20] sm:$0xff]
      %v262 = vld [vmem:[%s218 + $0x28] sm:$0xff]
      %v263 = vld [vmem:[%s218 + $0x30] sm:$0xff]
      %v264 = vld [vmem:[%s218 + $0x38] sm:$0xff]
      %v265 = vld [vmem:[%s218 + $0x40] sm:$0xff]
      %v266 = vld [vmem:[%s218 + $0x48] sm:$0xff]
      %v267 = vld [vmem:[%s218 + $0x50] sm:$0xff]
      %v268 = vmax.f32 %v246, 0.0
      %v269 = vmax.f32 %v247, 0.0
      %v270 = vmax.f32 %v248, 0.0
      %v271 = vmax.f32 %v249, 0.0
      %v272 = vmax.f32 %v250, 0.0
      %v273 = vmax.f32 %v251, 0.0
      %v274 = vmax.f32 %v252, 0.0
      %v275 = vmax.f32 %v253, 0.0
      %v276 = vmax.f32 %v254, 0.0
      %v277 = vmax.f32 %v255, 0.0
      %v278 = vmax.f32 %v256, 0.0
      %v279 = vmul.f32 %v246, %v257
      %v280 = vmul.f32 %v247, %v258
      %v281 = vmul.f32 %v248, %v259
      %v282 = vmul.f32 %v249, %v260
      %v283 = vmul.f32 %v250, %v261
      %v284 = vmul.f32 %v251, %v262
      %v285 = vmul.f32 %v252, %v263
      %v286 = vmul.f32 %v253, %v264
      %v287 = vmul.f32 %v254, %v265
      %v288 = vmul.f32 %v255, %v266
      %v289 = vmul.f32 %v256, %v267
      %v290 = vsub.f32 %v268, %v279
      %v291 = vsub.f32 %v269, %v280
      %v292 = vsub.f32 %v270, %v281
      %v293 = vsub.f32 %v271, %v282
      %v294 = vsub.f32 %v272, %v283
      %v295 = vsub.f32 %v273, %v284
      %v296 = vsub.f32 %v274, %v285
      %v297 = vsub.f32 %v275, %v286
      %v298 = vsub.f32 %v276, %v287
      %v299 = vsub.f32 %v277, %v288
      %v300 = vsub.f32 %v278, %v289
      %v301 = vand.u32 2147483647, %v246
      %v302 = vand.u32 2147483647, %v247
      %v303 = vand.u32 2147483647, %v248
      %v304 = vand.u32 2147483647, %v249
      %v305 = vand.u32 2147483647, %v250
      %v306 = vand.u32 2147483647, %v251
      %v307 = vand.u32 2147483647, %v252
      %v308 = vand.u32 2147483647, %v253
      %v309 = vand.u32 2147483647, %v254
      %v310 = vand.u32 2147483647, %v255
      %v311 = vand.u32 2147483647, %v256
      %v312 = vsub.f32 0.0, %v301
      %v313 = vsub.f32 0.0, %v302
      %v314 = vsub.f32 0.0, %v303
      %v315 = vsub.f32 0.0, %v304
      %v316 = vsub.f32 0.0, %v305
      %v317 = vsub.f32 0.0, %v306
      %v318 = vsub.f32 0.0, %v307
      %v319 = vsub.f32 0.0, %v308
      %v320 = vsub.f32 0.0, %v309
      %v321 = vsub.f32 0.0, %v310
      %v322 = vsub.f32 0.0, %v311
      %v323 = vmul.f32 %v312, 1.442695
      %v324 = vpow.pop %v323
      %v325 = vmul.f32 %v313, 1.442695
      %v326 = vpow.pop %v325
      %v327 = vmul.f32 %v314, 1.442695
      %v328 = vpow.pop %v327
      %v329 = vmul.f32 %v315, 1.442695
      %v330 = vpow.pop %v329
      %v331 = vmul.f32 %v316, 1.442695
      %v332 = vpow.pop %v331
      %v333 = vmul.f32 %v317, 1.442695
      %v334 = vpow.pop %v333
      %v335 = vmul.f32 %v318, 1.442695
      %v336 = vpow.pop %v335
      %v337 = vmul.f32 %v319, 1.442695
      %v338 = vpow.pop %v337
      %v339 = vmul.f32 %v320, 1.442695
      %v340 = vpow.pop %v339
      %v341 = vmul.f32 %v321, 1.442695
      %v342 = vpow.pop %v341
      %v343 = vmul.f32 %v322, 1.442695
      %v344 = vpow.pop %v343
      %v345 = vadd.f32 %v324, 1.0
      %v346 = vlog2.pop %v345
      %v347 = vmul.f32 %v346, 0.6931472
      %v348 = vmul.f32 -0.5, %v324
      %v349 = vadd.f32 %v348, 1.0
      %v350 = vmul.f32 %v349, %v324
      %v351 = vand.u32 2147483647, %v324
      %vm352 = vcmp.lt.f32.partialorder %v351, 0.0004427343
      %v353 = vsel %vm352, %v350, %v347
      %v354 = vadd.f32 %v326, 1.0
      %v355 = vlog2.pop %v354
      %v356 = vmul.f32 %v355, 0.6931472
      %v357 = vmul.f32 -0.5, %v326
      %v358 = vadd.f32 %v357, 1.0
      %v359 = vmul.f32 %v358, %v326
      %v360 = vand.u32 2147483647, %v326
      %vm361 = vcmp.lt.f32.partialorder %v360, 0.0004427343
      %v362 = vsel %vm361, %v359, %v356
      %v363 = vadd.f32 %v328, 1.0
      %v364 = vlog2.pop %v363
      %v365 = vmul.f32 %v364, 0.6931472
      %v366 = vmul.f32 -0.5, %v328
      %v367 = vadd.f32 %v366, 1.0
      %v368 = vmul.f32 %v367, %v328
      %v369 = vand.u32 2147483647, %v328
      %vm370 = vcmp.lt.f32.partialorder %v369, 0.0004427343
      %v371 = vsel %vm370, %v368, %v365
      %v372 = vadd.f32 %v330, 1.0
      %v373 = vlog2.pop %v372
      %v374 = vmul.f32 %v373, 0.6931472
      %v375 = vmul.f32 -0.5, %v330
      %v376 = vadd.f32 %v375, 1.0
      %v377 = vmul.f32 %v376, %v330
      %v378 = vand.u32 2147483647, %v330
      %vm379 = vcmp.lt.f32.partialorder %v378, 0.0004427343
      %v380 = vsel %vm379, %v377, %v374
      %v381 = vadd.f32 %v332, 1.0
      %v382 = vlog2.pop %v381
      %v383 = vmul.f32 %v382, 0.6931472
      %v384 = vmul.f32 -0.5, %v332
      %v385 = vadd.f32 %v384, 1.0
      %v386 = vmul.f32 %v385, %v332
      %v387 = vand.u32 2147483647, %v332
      %vm388 = vcmp.lt.f32.partialorder %v387, 0.0004427343
      %v389 = vsel %vm388, %v386, %v383
      %v390 = vadd.f32 %v334, 1.0
      %v391 = vlog2.pop %v390
      %v392 = vmul.f32 %v391, 0.6931472
      %v393 = vmul.f32 -0.5, %v334
      %v394 = vadd.f32 %v393, 1.0
      %v395 = vmul.f32 %v394, %v334
      %v396 = vand.u32 2147483647, %v334
      %vm397 = vcmp.lt.f32.partialorder %v396, 0.0004427343
      %v398 = vsel %vm397, %v395, %v392
      %v399 = vadd.f32 %v336, 1.0
      %v400 = vlog2.pop %v399
      %v401 = vmul.f32 %v400, 0.6931472
      %v402 = vmul.f32 -0.5, %v336
      %v403 = vadd.f32 %v402, 1.0
      %v404 = vmul.f32 %v403, %v336
      %v405 = vand.u32 2147483647, %v336
      %vm406 = vcmp.lt.f32.partialorder %v405, 0.0004427343
      %v407 = vsel %vm406, %v404, %v401
      %v408 = vadd.f32 %v338, 1.0
      %v409 = vlog2.pop %v408
      %v410 = vmul.f32 %v409, 0.6931472
      %v411 = vmul.f32 -0.5, %v338
      %v412 = vadd.f32 %v411, 1.0
      %v413 = vmul.f32 %v412, %v338
      %v414 = vand.u32 2147483647, %v338
      %vm415 = vcmp.lt.f32.partialorder %v414, 0.0004427343
      %v416 = vsel %vm415, %v413, %v410
      %v417 = vadd.f32 %v340, 1.0
      %v418 = vlog2.pop %v417
      %v419 = vmul.f32 %v418, 0.6931472
      %v420 = vmul.f32 -0.5, %v340
      %v421 = vadd.f32 %v420, 1.0
      %v422 = vmul.f32 %v421, %v340
      %v423 = vand.u32 2147483647, %v340
      %vm424 = vcmp.lt.f32.partialorder %v423, 0.0004427343
      %v425 = vsel %vm424, %v422, %v419
      %v426 = vadd.f32 %v342, 1.0
      %v427 = vlog2.pop %v426
      %v428 = vmul.f32 %v427, 0.6931472
      %v429 = vmul.f32 -0.5, %v342
      %v430 = vadd.f32 %v429, 1.0
      %v431 = vmul.f32 %v430, %v342
      %v432 = vand.u32 2147483647, %v342
      %vm433 = vcmp.lt.f32.partialorder %v432, 0.0004427343
      %v434 = vsel %vm433, %v431, %v428
      %v435 = vadd.f32 %v344, 1.0
      %v436 = vlog2.pop %v435
      %v437 = vmul.f32 %v436, 0.6931472
      %v438 = vmul.f32 -0.5, %v344
      %v439 = vadd.f32 %v438, 1.0
      %v440 = vmul.f32 %v439, %v344
      %v441 = vand.u32 2147483647, %v344
      %vm442 = vcmp.lt.f32.partialorder %v441, 0.0004427343
      %v443 = vsel %vm442, %v440, %v437
      %v444 = vadd.f32 %v290, %v353
      %v445 = vadd.f32 %v291, %v362
      %v446 = vadd.f32 %v292, %v371
      %v447 = vadd.f32 %v293, %v380
      %v448 = vadd.f32 %v294, %v389
      %v449 = vadd.f32 %v295, %v398
      %v450 = vadd.f32 %v296, %v407
      %v451 = vadd.f32 %v297, %v416
      %v452 = vadd.f32 %v298, %v425
      %v453 = vadd.f32 %v299, %v434
      %v454 = vadd.f32 %v300, %v443
      %p455 = scmp.lt.s32.totalorder %s229, 0
      // Predicated region
      $region33: #{tpu_custom_call.1} parent=27 // pred_check
        %p456 = pneg %p455
      $region34: #{tpu_custom_call.1} parent=27 // pred_check_branch
        %458 = sbr.rel (%p456) target = $region36
      $region35: #{tpu_custom_call.1} parent=27 // pred_region
        %v459 = vld [vmem:[%s228] sm:$0xff]
        %v460 = vld [vmem:[%s228 + $0x8] sm:$0xff]
        %v461 = vld [vmem:[%s228 + $0x10] sm:$0xff]
        %v462 = vld [vmem:[%s228 + $0x18] sm:$0xff]
        %v463 = vld [vmem:[%s228 + $0x20] sm:$0xff]
        %v464 = vld [vmem:[%s228 + $0x28] sm:$0xff]
        %v465 = vld [vmem:[%s228 + $0x30] sm:$0xff]
        %v466 = vld [vmem:[%s228 + $0x38] sm:$0xff]
        %v467 = vld [vmem:[%s228 + $0x40] sm:$0xff]
        %v468 = vld [vmem:[%s228 + $0x48] sm:$0xff]
        %v469 = vld [vmem:[%s228 + $0x50] sm:$0xff]
        %470 = vadd.xlane.f32.xlu0 %v444
        %v471 = vpop.xlane.xlu0 %470
        %472 = vadd.xlane.f32.xlu0 %v445
        %v473 = vpop.xlane.xlu0 %472
        %474 = vadd.xlane.f32.xlu0 %v446
        %v475 = vpop.xlane.xlu0 %474
        %476 = vadd.xlane.f32.xlu0 %v447
        %v477 = vpop.xlane.xlu0 %476
        %478 = vadd.xlane.f32.xlu0 %v448
        %v479 = vpop.xlane.xlu0 %478
        %480 = vadd.xlane.f32.xlu0 %v449
        %v481 = vpop.xlane.xlu0 %480
        %482 = vadd.xlane.f32.xlu0 %v450
        %v483 = vpop.xlane.xlu0 %482
        %484 = vadd.xlane.f32.xlu0 %v451
        %v485 = vpop.xlane.xlu0 %484
        %486 = vadd.xlane.f32.xlu0 %v452
        %v487 = vpop.xlane.xlu0 %486
        %488 = vadd.xlane.f32.xlu0 %v453
        %v489 = vpop.xlane.xlu0 %488
        %490 = vadd.xlane.f32.xlu0 %v454
        %v491 = vpop.xlane.xlu0 %490
        %v492 = vadd.f32 %v459, %v471
        %v493 = vadd.f32 %v460, %v473
        %v494 = vadd.f32 %v461, %v475
        %v495 = vadd.f32 %v462, %v477
        %v496 = vadd.f32 %v463, %v479
        %v497 = vadd.f32 %v464, %v481
        %v498 = vadd.f32 %v465, %v483
        %v499 = vadd.f32 %v466, %v485
        %v500 = vadd.f32 %v467, %v487
        %v501 = vadd.f32 %v468, %v489
        %v502 = vadd.f32 %v469, %v491
        %vm503 = vcmask 7168
        %504 = vst.msk [vmem:[%s228] sm:$0xff] %vm503, %v492
        %505 = vst.msk [vmem:[%s228 + $0x8] sm:$0xff] %vm503, %v493
        %506 = vst.msk [vmem:[%s228 + $0x10] sm:$0xff] %vm503, %v494
        %507 = vst.msk [vmem:[%s228 + $0x18] sm:$0xff] %vm503, %v495
        %508 = vst.msk [vmem:[%s228 + $0x20] sm:$0xff] %vm503, %v496
        %509 = vst.msk [vmem:[%s228 + $0x28] sm:$0xff] %vm503, %v497
        %510 = vst.msk [vmem:[%s228 + $0x30] sm:$0xff] %vm503, %v498
        %511 = vst.msk [vmem:[%s228 + $0x38] sm:$0xff] %vm503, %v499
        %512 = vst.msk [vmem:[%s228 + $0x40] sm:$0xff] %vm503, %v500
        %513 = vst.msk [vmem:[%s228 + $0x48] sm:$0xff] %vm503, %v501
        %514 = vst.msk [vmem:[%s228 + $0x50] sm:$0xff] %vm503, %v502
      $region36: #{tpu_custom_call.1} parent=27 // pred_fallthru
        _
      %p515 = scmp.ge.s32.totalorder %s229, 0
      // Predicated region
      $region37: #{tpu_custom_call.1} parent=27 // pred_check
        %p516 = pneg %p515
      $region38: #{tpu_custom_call.1} parent=27 // pred_check_branch
        %518 = sbr.rel (%p516) target = $region40
      $region39: #{tpu_custom_call.1} parent=27 // pred_region
        %s519 = smul.u32 %s229, 128
        %v520 = vlaneseq
        %v521 = vand.u32 %v520, 127
        %v522 = vstv %s519
        %v523 = vadd.s32 %v522, %v521
        %v524 = vld [vmem:[%s228] sm:$0xff]
        %v525 = vld [vmem:[%s228 + $0x8] sm:$0xff]
        %v526 = vld [vmem:[%s228 + $0x10] sm:$0xff]
        %v527 = vld [vmem:[%s228 + $0x18] sm:$0xff]
        %v528 = vld [vmem:[%s228 + $0x20] sm:$0xff]
        %v529 = vld [vmem:[%s228 + $0x28] sm:$0xff]
        %v530 = vld [vmem:[%s228 + $0x30] sm:$0xff]
        %v531 = vld [vmem:[%s228 + $0x38] sm:$0xff]
        %v532 = vld [vmem:[%s228 + $0x40] sm:$0xff]
        %v533 = vld [vmem:[%s228 + $0x48] sm:$0xff]
        %v534 = vld [vmem:[%s228 + $0x50] sm:$0xff]
        %vm535 = vcmp.lt.s32.totalorder %v523, 32
        %v536 = vsel %vm535, %v444, 0.0
        %v537 = vsel %vm535, %v445, 0.0
        %v538 = vsel %vm535, %v446, 0.0
        %v539 = vsel %vm535, %v447, 0.0
        %v540 = vsel %vm535, %v448, 0.0
        %v541 = vsel %vm535, %v449, 0.0
        %v542 = vsel %vm535, %v450, 0.0
        %v543 = vsel %vm535, %v451, 0.0
        %v544 = vsel %vm535, %v452, 0.0
        %v545 = vsel %vm535, %v453, 0.0
        %v546 = vsel %vm535, %v454, 0.0
        %547 = vadd.xlane.f32.xlu0 %v536
        %v548 = vpop.xlane.xlu0 %547
        %549 = vadd.xlane.f32.xlu0 %v537
        %v550 = vpop.xlane.xlu0 %549
        %551 = vadd.xlane.f32.xlu0 %v538
        %v552 = vpop.xlane.xlu0 %551
        %553 = vadd.xlane.f32.xlu0 %v539
        %v554 = vpop.xlane.xlu0 %553
        %555 = vadd.xlane.f32.xlu0 %v540
        %v556 = vpop.xlane.xlu0 %555
        %557 = vadd.xlane.f32.xlu0 %v541
        %v558 = vpop.xlane.xlu0 %557
        %559 = vadd.xlane.f32.xlu0 %v542
        %v560 = vpop.xlane.xlu0 %559
        %561 = vadd.xlane.f32.xlu0 %v543
        %v562 = vpop.xlane.xlu0 %561
        %563 = vadd.xlane.f32.xlu0 %v544
        %v564 = vpop.xlane.xlu0 %563
        %565 = vadd.xlane.f32.xlu0 %v545
        %v566 = vpop.xlane.xlu0 %565
        %567 = vadd.xlane.f32.xlu0 %v546
        %v568 = vpop.xlane.xlu0 %567
        %v569 = vadd.f32 %v524, %v548
        %v570 = vadd.f32 %v525, %v550
        %v571 = vadd.f32 %v526, %v552
        %v572 = vadd.f32 %v527, %v554
        %v573 = vadd.f32 %v528, %v556
        %v574 = vadd.f32 %v529, %v558
        %v575 = vadd.f32 %v530, %v560
        %v576 = vadd.f32 %v531, %v562
        %v577 = vadd.f32 %v532, %v564
        %v578 = vadd.f32 %v533, %v566
        %v579 = vadd.f32 %v534, %v568
        %vm580 = vcmask 7168
        %581 = vst.msk [vmem:[%s228] sm:$0xff] %vm580, %v569
        %582 = vst.msk [vmem:[%s228 + $0x8] sm:$0xff] %vm580, %v570
        %583 = vst.msk [vmem:[%s228 + $0x10] sm:$0xff] %vm580, %v571
        %584 = vst.msk [vmem:[%s228 + $0x18] sm:$0xff] %vm580, %v572
        %585 = vst.msk [vmem:[%s228 + $0x20] sm:$0xff] %vm580, %v573
        %586 = vst.msk [vmem:[%s228 + $0x28] sm:$0xff] %vm580, %v574
        %587 = vst.msk [vmem:[%s228 + $0x30] sm:$0xff] %vm580, %v575
        %588 = vst.msk [vmem:[%s228 + $0x38] sm:$0xff] %vm580, %v576
        %589 = vst.msk [vmem:[%s228 + $0x40] sm:$0xff] %vm580, %v577
        %590 = vst.msk [vmem:[%s228 + $0x48] sm:$0xff] %vm580, %v578
        %591 = vst.msk [vmem:[%s228 + $0x50] sm:$0xff] %vm580, %v579
      $region40: #{tpu_custom_call.1} parent=27 // pred_fallthru
        _
      %p592 = scmp.lt.s32.totalorder %s18, 1
      %s593 = scalar_select %p592, %s18, 1
      %p594 = scmp.lt.s32.totalorder %s19, 0
      %s595 = scalar_select %p594, %s19, 0
      %s596 = smul.addr %s595, 11
      %s597 = smul.addr %s593, 11
      %s598 = sadd.s32 %s596, %s597
      %s599 = smul.addr %s598, 8
      %s600 = scalar_lea.vmem %s2, %s599
      // Predicated region
      $region41: #{tpu_custom_call.1} parent=27 // pred_check
        %p601 = pneg %p112
      $region42: #{tpu_custom_call.1} parent=27 // pred_check_branch
        %603 = sbr.rel (%p601) target = $region44
      $region43: #{tpu_custom_call.1} parent=27 // pred_region
        _
      $region44: #{tpu_custom_call.1} parent=27 // pred_fallthru
        _
    $region28: #{tpu_custom_call.1} parent=5 // pred_fallthru
      _
    %p604 = scmp.le.s32.totalorder 2, %s8
    // Predicated region
    $region45: #{tpu_custom_call.1} parent=5 // pred_check
      %p605 = pneg %p604
    $region46: #{tpu_custom_call.1} parent=5 // pred_check_branch
      %607 = sbr.rel (%p605) target = $region48
    $region47: #{tpu_custom_call.1} parent=5 // pred_region
      %s608 = ssub.s32 %s8, 2
      // Predicated region
      $region49: #{tpu_custom_call.1} parent=47 // pred_check
        %p609 = pneg %p118
      $region50: #{tpu_custom_call.1} parent=47 // pred_check_branch
        %611 = sbr.rel (%p609) target = $region52
      $region51: #{tpu_custom_call.1} parent=47 // pred_region
        %p612 = scmp.lt.s32.totalorder %s21, 1
        %s613 = scalar_select %p612, %s21, 1
        %p614 = scmp.lt.s32.totalorder %s22, 0
        %s615 = scalar_select %p614, %s22, 0
        %s616 = smul.addr %s615, 11
        %s617 = smul.addr %s613, 11
        %s618 = sadd.s32 %s616, %s617
        %s619 = smul.addr %s618, 8
        %s620 = scalar_lea.vmem %s2, %s619
      $region52: #{tpu_custom_call.1} parent=47 // pred_fallthru
        _
    $region48: #{tpu_custom_call.1} parent=5 // pred_fallthru
      _
  $region6: #{tpu_custom_call.1} parent=0 // loop_footer
    %s12 = sadd.s32 1, %s8
  $region7: #{tpu_custom_call.1} parent=0 // loop_footer_branch
    %7 = sbr.rel target = $region3
  $region8: #{tpu_custom_call.1} parent=0 // loop_exit
    _

</llo_original>
